<compile_context>
chip_gen: v7x
topology: tpu7x:2x2x1
jax: 0.10.0
libtpu: 0.0.40
codegen_flags: <defaults>
</compile_context>

<pallas_src>
import math
import functools

import jax
import jax.numpy as jnp
from jax.experimental import pallas as pl
from jax.experimental.pallas import tpu as pltpu


# ---------------------------------------------------------------------------
# Elementwise activation math (shared by kernel and pure-JAX reference).
# ---------------------------------------------------------------------------
_SQRT_2 = math.sqrt(2.0)
_SQRT_2_OVER_PI = math.sqrt(2.0 / math.pi)

# Activations that are safe/cheap to compute directly in the input dtype
# (piecewise linear: no transcendentals, no accuracy concern in bf16).
_NO_UPCAST = frozenset({"relu", "relu6", "linear"})

_LANE = 1024                       # lane-dense slab width (multiple of 128)
_TARGET_TILE_BYTES = 2 * 1024 * 1024   # ~2 MiB per input tile -> 8 MiB total w/ dbl-buf
_MIN_PALLAS_ELEMS = _LANE          # below this, use plain fused XLA elementwise


def _gelu_erf(x):
    # x * 0.5 * (1 + erf(x / sqrt(2)))
    return x * 0.5 * (1.0 + jax.lax.erf(x / _SQRT_2))


def _apply_activation(x, activation_type: str):
    if activation_type in ("gelu", "gelu_python"):
        return _gelu_erf(x)
    if activation_type == "gelu_10":
        return jnp.clip(_gelu_erf(x), -10.0, 10.0)
    if activation_type == "gelu_fast":
        return 0.5 * x * (1.0 + jnp.tanh(x * 0.7978845608 * (1.0 + 0.044715 * x * x)))
    if activation_type == "gelu_new":
        # x*x*x instead of x**3.0 (avoids pow->exp/log on the single EUP slot,
        # and is unconditionally correct for negative x).
        return 0.5 * x * (1.0 + jnp.tanh(_SQRT_2_OVER_PI * (x + 0.044715 * (x * x * x))))
    if activation_type == "linear":
        return x
    if activation_type == "mish":
        # x * tanh(softplus(x)); numerically-stable softplus
        sp = jnp.where(x > 20.0, x, jnp.log1p(jnp.exp(jnp.minimum(x, 20.0))))
        return x * jnp.tanh(sp)
    if activation_type == "quick_gelu":
        return x * jax.nn.sigmoid(1.702 * x)
    if activation_type == "relu":
        return jnp.maximum(x, 0.0)
    if activation_type == "relu6":
        return jnp.clip(x, 0.0, 6.0)
    if activation_type == "sigmoid":
        return jax.nn.sigmoid(x)
    if activation_type in ("silu", "swish"):
        return x * jax.nn.sigmoid(x)
    if activation_type == "tanh":
        return jnp.tanh(x)
    raise KeyError(f"function {activation_type} not found in activation mapping")


# ---------------------------------------------------------------------------
# Pallas kernel: one (TM, LANE) tile per grid step, pure elementwise.
# ---------------------------------------------------------------------------
def _activation_kernel(x_ref, o_ref, *, activation_type):
    x = x_ref[...]
    if activation_type not in _NO_UPCAST:
        x = x.astype(jnp.float32)
    y = _apply_activation(x, activation_type)
    o_ref[...] = y.astype(o_ref.dtype)


@functools.partial(jax.jit, static_argnames=("activation_type",))
def activations_forward(x, activation_type: str):
    """Equivalent of Activations(activation_type)(x)."""
    orig_shape = x.shape
    total = int(math.prod(orig_shape)) if orig_shape else 1

    if total == 0:
        return x

    # Tiny-tensor fallback: launch + per-step overhead dominates; XLA's fused
    # elementwise op is already optimal there.
    if total < _MIN_PALLAS_ELEMS:
        xf = x if activation_type in _NO_UPCAST else x.astype(jnp.float32)
        return _apply_activation(xf, activation_type).astype(x.dtype)

    # ---- lane-dense slab: flatten to 1D and view as (rows, _LANE) ----------
    flat = x.reshape(-1)
    lane = _LANE
    rows = -(-total // lane)  # ceil div

    itemsize = jnp.dtype(x.dtype).itemsize
    max_tile_rows = max(8, (_TARGET_TILE_BYTES // (lane * itemsize)) // 8 * 8)

    if rows <= max_tile_rows:
        # Single block equal to full array dims (always a legal block shape).
        tm = rows
        rows_padded = rows
    else:
        tm = max_tile_rows                      # multiple of 8
        rows_padded = -(-rows // tm) * tm       # round rows up to multiple of tm

    padded_total = rows_padded * lane
    if padded_total != total:
        # Zero padding is finite through every activation; it is sliced off below.
        flat = jnp.pad(flat, (0, padded_total - total))
    x2d = flat.reshape(rows_padded, lane)

    kernel = functools.partial(_activation_kernel, activation_type=activation_type)
    out2d = pl.pallas_call(
        kernel,
        out_shape=jax.ShapeDtypeStruct(x2d.shape, x.dtype),
        grid=(rows_padded // tm,),
        in_specs=[pl.BlockSpec((tm, lane), lambda i: (i, 0))],
        out_specs=pl.BlockSpec((tm, lane), lambda i: (i, 0)),
        compiler_params=pltpu.CompilerParams(
            dimension_semantics=("parallel",)),   # shard across TCs on v7x
    )(x2d)

    out_flat = out2d.reshape(-1)
    if padded_total != total:
        out_flat = out_flat[:total]
    return out_flat.reshape(orig_shape)


# ---------------------------------------------------------------------------
# Pure-JAX reference (mirrors the PyTorch forward semantics)
# ---------------------------------------------------------------------------
def _reference(x, activation_type: str):
    xf = x if activation_type in _NO_UPCAST else x.astype(jnp.float32)
    return _apply_activation(xf, activation_type).astype(x.dtype)


if __name__ == "__main__":
    key = jax.random.PRNGKey(0)
    k0, k1 = jax.random.split(key)

    act_types = [
        "gelu", "gelu_10", "gelu_fast", "gelu_new", "gelu_python",
        "linear", "mish", "quick_gelu", "relu", "relu6",
        "sigmoid", "silu", "swish", "tanh",
    ]

    ok = True

    # NCHW-shaped input, consistent with conv-style usage upstream.
    x_small = jax.random.normal(k0, (2, 4, 16, 16), dtype=jnp.float32) * 3.0
    for act in act_types:
        y = jax.block_until_ready(activations_forward(x_small, act))
        y_ref = _reference(x_small, act)
        if not jnp.allclose(y, y_ref, atol=1e-5, rtol=1e-5):
            ok = False
            print(f"MISMATCH for activation {act} (small input)")

    # Moderately sized, awkwardly shaped input to exercise multi-tile grid,
    # lane-dense repacking and tail padding / un-padding.
    x_med = jax.random.normal(k1, (3, 777, 513), dtype=jnp.float32) * 3.0
    for act in ("gelu_new", "silu", "relu"):
        y = jax.block_until_ready(activations_forward(x_med, act))
        y_ref = _reference(x_med, act)
        if not jnp.allclose(y, y_ref, atol=1e-5, rtol=1e-5):
            ok = False
            print(f"MISMATCH for activation {act} (medium input)")

    if ok:
        print("KERNEL_OK")
</pallas_src>

<mosaic_0001>
module attributes {stable_mosaic.version = 11 : i64} {
  func.func @_activation_kernel(%arg0: i32, %arg1: memref<2x1024xf32, #tpu.memory_space<vmem>>, %arg2: memref<2x1024xf32, #tpu.memory_space<vmem>>) attributes {dimension_semantics = [#tpu.dimension_semantics<parallel>], iteration_bounds = array<i64: 1>, scalar_prefetch = 0 : i64, scratch_operands = 0 : i64, tpu.core_type = #tpu.core_type<tc>, window_params = [{transform_indices = @transform_0, window_bounds = array<i64: 2, 1024>}, {transform_indices = @transform_1, window_bounds = array<i64: 2, 1024>}]} {
    %c0 = arith.constant 0 : index
    %c0_0 = arith.constant 0 : index
    %0 = vector.load %arg1[%c0, %c0_0] : memref<2x1024xf32, #tpu.memory_space<vmem>>, vector<2x1024xf32>
    %cst = arith.constant 5.000000e-01 : f32
    %1 = vector.broadcast %cst : f32 to vector<2x1024xf32>
    %2 = arith.mulf %0, %1 : vector<2x1024xf32>
    %cst_1 = arith.constant 1.41421354 : f32
    %3 = vector.broadcast %cst_1 : f32 to vector<2x1024xf32>
    %4 = arith.divf %0, %3 : vector<2x1024xf32>
    %5 = math.erf %4 : vector<2x1024xf32>
    %cst_2 = arith.constant 1.000000e+00 : f32
    %6 = vector.broadcast %cst_2 : f32 to vector<2x1024xf32>
    %7 = arith.addf %6, %5 : vector<2x1024xf32>
    %8 = arith.mulf %2, %7 : vector<2x1024xf32>
    %c0_3 = arith.constant 0 : index
    %c0_4 = arith.constant 0 : index
    %9 = vector.load %arg2[%c0_3, %c0_4] : memref<2x1024xf32, #tpu.memory_space<vmem>>, vector<2x1024xf32>
    tpu.vector_store %arg2[%c0_3, %c0_4], %8 {strides = array<i32>} : memref<2x1024xf32, #tpu.memory_space<vmem>>, vector<2x1024xf32>,
    return
  }
  func.func @transform_0(%arg0: i32) -> (i32, i32) {
    %c0_i32 = arith.constant 0 : i32
    %c0_i32_0 = arith.constant 0 : i32
    return %arg0, %c0_i32 : i32, i32
  }
  func.func @transform_1(%arg0: i32) -> (i32, i32) {
    %c0_i32 = arith.constant 0 : i32
    %c0_i32_0 = arith.constant 0 : i32
    return %arg0, %c0_i32 : i32, i32
  }
}

</mosaic_0001>

<llo_original>
// kernel: activations_forward.1
$region0: #{activations_forward.1}
  #allocation0 [shape = 'u32[]', space=smem, size = 0x4, offset = 0x4, fixed_abs, tag = 'smem constant byte address 0x4 - core index']
  #allocation1 [shape = 'u32[144,128]{1,0:T(1,128)}', space=vmem, size = 0x12000, scoped, tag = 'internal scratch']
  %s0 = inlined_call_operand.vmem [shape: f32[2,1024], index: 0, kind: input, shape index: {}]
  %s1 = inlined_call_operand.vmem [shape: f32[2,1024], index: 1, kind: output, shape index: {}]
  %s2 = sld [smem:[#allocation0]]
  $region14: #{activations_forward.1} parent=0
    _
  %s4 = ssub.s32 1, %s2
  %s5 = scalar_select 0, %s4, %s2
  // Predicated region
  $region2: #{activations_forward.1} parent=0 // pred_check
    _
  $region3: #{activations_forward.1} parent=0 // pred_check_branch
    %7 = sbr.rel (0) target = $region5
  $region4: #{activations_forward.1} parent=0 // pred_region
    _
  $region5: #{activations_forward.1} parent=0 // pred_fallthru
    _
  %v8 = vld [vmem:[%s0] sm:$0xff]
  %v9 = vld [vmem:[%s0 + $0x8] sm:$0xff]
  %v10 = vmul.f32 %v8, 0.5
  %v11 = vmul.f32 %v9, 0.5
  %v12 = vrcp.pop 1.4142135
  %v13 = vmul.f32 %v8, %v12
  %v14 = vmul.f32 %v9, %v12
  %v15 = verf.f32.pop %v13
  %v16 = verf.f32.pop %v14
  %v17 = vadd.f32 %v15, 1.0
  %v18 = vadd.f32 %v16, 1.0
  %v19 = vmul.f32 %v10, %v17
  %v20 = vmul.f32 %v11, %v18
  %21 = vst [vmem:[%s1] sm:$0xff] %v19
  %22 = vst [vmem:[%s1 + $0x8] sm:$0xff] %v20
  // Predicated region
  $region6: #{activations_forward.1} parent=0 // pred_check
    _
  $region7: #{activations_forward.1} parent=0 // pred_check_branch
    %24 = sbr.rel (0) target = $region9
  $region8: #{activations_forward.1} parent=0 // pred_region
    _
  $region9: #{activations_forward.1} parent=0 // pred_fallthru
    _
  // Predicated region
  $region10: #{activations_forward.1} parent=0 // pred_check
    _
  $region11: #{activations_forward.1} parent=0 // pred_check_branch
    %26 = sbr.rel (0) target = $region13
  $region12: #{activations_forward.1} parent=0 // pred_region
    _
  $region13: #{activations_forward.1} parent=0 // pred_fallthru
    _

</llo_original>
